<compile_context>
chip_gen: v7x
topology: tpu7x:2x2x1
jax: 0.10.0
libtpu: 0.0.40
codegen_flags: <defaults>
</compile_context>

<pallas_src>
import functools

import jax
import jax.numpy as jnp
import numpy as np
from jax.experimental import pallas as pl
from jax.experimental.pallas import tpu as pltpu


def _qwk_kernel(y_pred_ref, y_true_ref, out_ref, conf_ref, *,
                n_valid, num_classes, weight_type):
    i = pl.program_id(0)

    @pl.when(i == 0)
    def _init():
        conf_ref[...] = jnp.zeros_like(conf_ref)

    logits = y_pred_ref[...]                  # (C, TN), native dtype
    labels = y_true_ref[...]                  # (1, TN) int32
    c, tn = logits.shape

    # Tail mask: global sample index must be < n_valid (padded/OOB lanes of
    # the last tile contribute nothing).
    col = jax.lax.broadcasted_iota(jnp.int32, (1, tn), 1) + i * tn
    valid = col < n_valid                     # (1, TN) bool

    # argmax over the class (sublane) axis, first maximal index — matches
    # torch.argmax on softmax(y_pred) since softmax is argmax-invariant.
    row_iota = jax.lax.broadcasted_iota(jnp.int32, (c, tn), 0)
    lmax = jnp.max(logits, axis=0, keepdims=True)             # (1, TN)
    cand = jnp.where(logits >= lmax, row_iota, c)
    pred_idx = jnp.min(cand, axis=0, keepdims=True)           # (1, TN)

    # bf16 one-hots (0/1 exact in bf16) feeding the MXU; the true one-hot
    # carries the tail mask so invalid columns contribute zero counts.
    onehot_pred = (row_iota == pred_idx).astype(jnp.bfloat16)                  # (C, TN)
    onehot_true = jnp.logical_and(row_iota == labels, valid).astype(jnp.bfloat16)

    # confusion[t, p] += sum_n onehot_true[t, n] * onehot_pred[p, n]
    # (MXU contraction over the TN lane axis, f32 accumulate)
    conf_ref[...] += jax.lax.dot_general(
        onehot_true, onehot_pred,
        dimension_numbers=(((1,), (1,)), ((), ())),
        preferred_element_type=jnp.float32)

    @pl.when(i == pl.num_programs(0) - 1)
    def _finalize():
        conf = conf_ref[...]                                  # (C, C) raw counts

        # Weight matrix built in-kernel (tiny, finalize-only).
        ci = jax.lax.broadcasted_iota(jnp.int32, (num_classes, num_classes), 0)
        cj = jax.lax.broadcasted_iota(jnp.int32, (num_classes, num_classes), 1)
        diff = (ci - cj).astype(jnp.float32)
        if weight_type == "linear":
            w = jnp.abs(diff)
        else:  # quadratic
            w = diff * diff

        n = jnp.float32(n_valid)
        # Histograms derived from the confusion matrix (no per-tile sublane
        # reductions over the big one-hots needed).
        hist_true = jnp.sum(conf, axis=1, keepdims=True)      # (C, 1)
        hist_pred = jnp.sum(conf, axis=0, keepdims=True)      # (1, C)

        num = jnp.sum(w * conf) / n                           # conf.sum() == N
        den = jnp.sum(w * (hist_true * hist_pred)) / (n * n)  # expected.sum() == N*N
        # TODO(synk): den can be 0 for degenerate batches (all-one-class);
        # the PyTorch reference has the same behavior, so no eps is added.
        out_ref[0, 0] = 1.0 - num / den


def make_weight_matrix(num_classes, weight_type="quadratic"):
    i = jnp.arange(num_classes, dtype=jnp.float32)[:, None]
    j = jnp.arange(num_classes, dtype=jnp.float32)[None, :]
    if weight_type == "linear":
        return jnp.abs(i - j)
    if weight_type == "quadratic":
        return (i - j) ** 2
    raise ValueError("weight_type must be 'linear' or 'quadratic'")


def weighted_kappa_loss(y_pred, y_true, num_classes, weight_type="quadratic",
                        block_n=16384):
    """y_pred: (N, C) logits (any float dtype); y_true: flattened to (N,) ints."""
    if weight_type not in ("linear", "quadratic"):
        raise ValueError("weight_type must be 'linear' or 'quadratic'")

    n, c = y_pred.shape
    assert c == num_classes

    # Lane-dense layout plumbing: classes on sublanes, samples on lanes.
    # y_pred keeps its native dtype (no forced f32 cast in the wrapper).
    y_pred_t = jnp.transpose(y_pred)                      # (C, N)
    y_true2d = y_true.reshape(1, -1).astype(jnp.int32)    # (1, N)

    block_n = max(128, (block_n // 128) * 128)
    if n <= block_n:
        tn = n               # single full-extent block (allowed: equals dim)
    else:
        tn = block_n         # multiple of 128; tail tile is masked in-kernel
    grid = (pl.cdiv(n, tn),)

    # VMEM budget: 2 buffers per input tile + headroom for intermediates,
    # capped well below v7x's 64 MiB physical VMEM.
    itemsize = jnp.dtype(y_pred_t.dtype).itemsize
    block_bytes = num_classes * tn * itemsize + tn * 4
    vmem_limit = int(min(max(4 * block_bytes + (16 << 20), 16 << 20), 64 << 20))

    kernel = functools.partial(_qwk_kernel, n_valid=n,
                               num_classes=num_classes, weight_type=weight_type)

    kappa = pl.pallas_call(
        kernel,
        out_shape=jax.ShapeDtypeStruct((1, 1), jnp.float32),
        grid_spec=pltpu.PrefetchScalarGridSpec(
            num_scalar_prefetch=0,
            grid=grid,
            in_specs=[
                pl.BlockSpec((num_classes, tn), lambda i: (0, i)),  # y_pred^T
                pl.BlockSpec((1, tn), lambda i: (0, i)),            # labels
            ],
            out_specs=pl.BlockSpec(memory_space=pltpu.SMEM),        # scalar kappa
            scratch_shapes=[pltpu.VMEM((num_classes, num_classes), jnp.float32)],
        ),
        compiler_params=pltpu.CompilerParams(
            dimension_semantics=("arbitrary",),   # N axis is a reduction
            vmem_limit_bytes=vmem_limit,
        ),
    )(y_pred_t, y_true2d)
    return kappa[0, 0]


def _reference(y_pred, y_true, num_classes, weight_type="quadratic"):
    # Pure-JAX reference mirroring the PyTorch forward exactly.
    w = make_weight_matrix(num_classes, weight_type)
    y_true = y_true.reshape(-1).astype(jnp.int32)
    probs = jax.nn.softmax(y_pred.astype(jnp.float32), axis=1)
    preds = jnp.argmax(probs, axis=1)
    oh_t = jax.nn.one_hot(y_true, num_classes)
    oh_p = jax.nn.one_hot(preds, num_classes)
    hist_true = oh_t.sum(0)
    hist_pred = oh_p.sum(0)
    conf = oh_t.T @ oh_p
    conf = conf / conf.sum()
    expected = jnp.outer(hist_true, hist_pred)
    expected = expected / expected.sum()
    return 1.0 - (w * conf).sum() / (w * expected).sum()


if __name__ == "__main__":
    num_classes = 8
    key = jax.random.PRNGKey(0)
    k1, k2, k3, k4 = jax.random.split(key, 4)

    # Case 1: small single-tile batch (quadratic weights).
    y_pred = jax.random.normal(k1, (16, num_classes), dtype=jnp.float32)
    y_true = jax.random.randint(k2, (16,), 0, num_classes, dtype=jnp.int32)
    kappa = jax.block_until_ready(
        weighted_kappa_loss(y_pred, y_true, num_classes, "quadratic"))
    ref = jax.block_until_ready(_reference(y_pred, y_true, num_classes, "quadratic"))
    np.testing.assert_allclose(np.asarray(kappa), np.asarray(ref),
                               rtol=1e-5, atol=1e-5)

    # Case 2: multi-tile grid with a masked partial tail (linear weights).
    y_pred2 = jax.random.normal(k3, (300, num_classes), dtype=jnp.float32)
    y_true2 = jax.random.randint(k4, (300,), 0, num_classes, dtype=jnp.int32)
    kappa2 = jax.block_until_ready(
        weighted_kappa_loss(y_pred2, y_true2, num_classes, "linear", block_n=128))
    ref2 = jax.block_until_ready(_reference(y_pred2, y_true2, num_classes, "linear"))
    np.testing.assert_allclose(np.asarray(kappa2), np.asarray(ref2),
                               rtol=1e-5, atol=1e-5)

    print("KERNEL_OK")
</pallas_src>

<mosaic_0001>
module attributes {stable_mosaic.version = 11 : i64} {
  func.func @_qwk_kernel(%arg0: i32, %arg1: memref<8x16xf32, #tpu.memory_space<vmem>>, %arg2: memref<1x16xi32, #tpu.memory_space<vmem>>, %arg3: memref<1x1xf32, #tpu.memory_space<smem>>, %arg4: memref<8x8xf32, #tpu.memory_space<vmem>>) attributes {dimension_semantics = [#tpu.dimension_semantics<arbitrary>], iteration_bounds = array<i64: 1>, scalar_prefetch = 0 : i64, scratch_operands = 1 : i64, tpu.core_type = #tpu.core_type<tc>, window_params = [{transform_indices = @transform_0, window_bounds = array<i64: 8, 16>}, {transform_indices = @transform_1, window_bounds = array<i64: 1, 16>}, {transform_indices = @transform_2, window_bounds = array<i64: 1, 1>}]} {
    %c0_i32 = arith.constant 0 : i32
    %0 = arith.cmpi eq, %arg0, %c0_i32 : i32
    %1 = arith.extui %0 : i1 to i32
    %c0_i32_0 = arith.constant 0 : i32
    %2 = arith.cmpi ne, %1, %c0_i32_0 : i32
    scf.if %2 {
      %cst_13 = arith.constant 0.000000e+00 : f32
      %39 = vector.broadcast %cst_13 : f32 to vector<8x8xf32>
      %c0_14 = arith.constant 0 : index
      %c0_15 = arith.constant 0 : index
      %40 = vector.load %arg4[%c0_14, %c0_15] : memref<8x8xf32, #tpu.memory_space<vmem>>, vector<8x8xf32>
      tpu.vector_store %arg4[%c0_14, %c0_15], %39 {strides = array<i32>} : memref<8x8xf32, #tpu.memory_space<vmem>>, vector<8x8xf32>,
    } else {
    }
    %c0 = arith.constant 0 : index
    %c0_1 = arith.constant 0 : index
    %3 = vector.load %arg1[%c0, %c0_1] : memref<8x16xf32, #tpu.memory_space<vmem>>, vector<8x16xf32>
    %c0_2 = arith.constant 0 : index
    %c0_3 = arith.constant 0 : index
    %4 = vector.load %arg2[%c0_2, %c0_3] : memref<1x16xi32, #tpu.memory_space<vmem>>, vector<1x16xi32>
    %5 = tpu.iota {dimensions = array<i32: 1>} : vector<1x16xi32>
    %c16_i32 = arith.constant 16 : i32
    %6 = arith.muli %arg0, %c16_i32 : i32
    %7 = vector.broadcast %6 : i32 to vector<1x16xi32>
    %8 = arith.addi %5, %7 : vector<1x16xi32>
    %c16_i32_4 = arith.constant 16 : i32
    %9 = vector.broadcast %c16_i32_4 : i32 to vector<1x16xi32>
    %10 = arith.cmpi slt, %8, %9 : vector<1x16xi32>
    %11 = tpu.iota {dimensions = array<i32: 0>} : vector<8x16xi32>
    %cst = arith.constant dense<0xFF800000> : vector<16xf32>
    %12 = vector.multi_reduction <maximumf>, %3, %cst [0] : vector<8x16xf32> to vector<16xf32>
    %13 = vector.shape_cast %12 : vector<16xf32> to vector<1x16xf32>
    %14 = vector.broadcast %13 : vector<1x16xf32> to vector<8x16xf32>
    %15 = arith.cmpf oge, %3, %14 : vector<8x16xf32>
    %c8_i32 = arith.constant 8 : i32
    %16 = vector.broadcast %c8_i32 : i32 to vector<8x16xi32>
    %17 = arith.select %15, %11, %16 : vector<8x16xi1>, vector<8x16xi32>
    %cst_5 = arith.constant dense<2147483647> : vector<16xi32>
    %18 = vector.multi_reduction <minsi>, %17, %cst_5 [0] : vector<8x16xi32> to vector<16xi32>
    %19 = vector.shape_cast %18 : vector<16xi32> to vector<1x16xi32>
    %20 = vector.broadcast %19 : vector<1x16xi32> to vector<8x16xi32>
    %21 = arith.cmpi eq, %11, %20 : vector<8x16xi32>
    %22 = arith.extui %21 : vector<8x16xi1> to vector<8x16xi32>
    %23 = arith.sitofp %22 : vector<8x16xi32> to vector<8x16xf32>
    %24 = arith.truncf %23 : vector<8x16xf32> to vector<8x16xbf16>
    %25 = vector.broadcast %4 : vector<1x16xi32> to vector<8x16xi32>
    %26 = arith.cmpi eq, %11, %25 : vector<8x16xi32>
    %27 = vector.broadcast %10 : vector<1x16xi1> to vector<8x16xi1>
    %28 = arith.andi %26, %27 : vector<8x16xi1>
    %29 = arith.extui %28 : vector<8x16xi1> to vector<8x16xi32>
    %30 = arith.sitofp %29 : vector<8x16xi32> to vector<8x16xf32>
    %31 = arith.truncf %30 : vector<8x16xf32> to vector<8x16xbf16>
    %c0_6 = arith.constant 0 : index
    %c0_7 = arith.constant 0 : index
    %32 = vector.load %arg4[%c0_6, %c0_7] : memref<8x8xf32, #tpu.memory_space<vmem>>, vector<8x8xf32>
    %cst_8 = arith.constant dense<0.000000e+00> : vector<8x8xf32>
    %33 = tpu.matmul %31, %24, %cst_8 {dimension_numbers = #tpu.dot_dimension_numbers<[1], [1], [0], [0], [0, 0, 1, 0], [], []>} : vector<8x16xbf16>, vector<8x16xbf16>, vector<8x8xf32> -> vector<8x8xf32>
    %34 = arith.addf %32, %33 : vector<8x8xf32>
    %c0_9 = arith.constant 0 : index
    %c0_10 = arith.constant 0 : index
    %35 = vector.load %arg4[%c0_9, %c0_10] : memref<8x8xf32, #tpu.memory_space<vmem>>, vector<8x8xf32>
    tpu.vector_store %arg4[%c0_9, %c0_10], %34 {strides = array<i32>} : memref<8x8xf32, #tpu.memory_space<vmem>>, vector<8x8xf32>,
    %c0_i32_11 = arith.constant 0 : i32
    %36 = arith.cmpi eq, %arg0, %c0_i32_11 : i32
    %37 = arith.extui %36 : i1 to i32
    %c0_i32_12 = arith.constant 0 : i32
    %38 = arith.cmpi ne, %37, %c0_i32_12 : i32
    scf.if %38 {
      %c0_13 = arith.constant 0 : index
      %c0_14 = arith.constant 0 : index
      %39 = vector.load %arg4[%c0_13, %c0_14] : memref<8x8xf32, #tpu.memory_space<vmem>>, vector<8x8xf32>
      %40 = tpu.iota {dimensions = array<i32: 0>} : vector<8x8xi32>
      %41 = tpu.iota {dimensions = array<i32: 1>} : vector<8x8xi32>
      %42 = arith.subi %40, %41 : vector<8x8xi32>
      %43 = arith.sitofp %42 : vector<8x8xi32> to vector<8x8xf32>
      %44 = arith.mulf %43, %43 : vector<8x8xf32>
      %cst_15 = arith.constant dense<0.000000e+00> : vector<8xf32>
      %45 = vector.multi_reduction <add>, %39, %cst_15 [1] : vector<8x8xf32> to vector<8xf32>
      %46 = vector.shape_cast %45 : vector<8xf32> to vector<8x1xf32>
      %cst_16 = arith.constant dense<0.000000e+00> : vector<8xf32>
      %47 = vector.multi_reduction <add>, %39, %cst_16 [0] : vector<8x8xf32> to vector<8xf32>
      %48 = vector.shape_cast %47 : vector<8xf32> to vector<1x8xf32>
      %49 = arith.mulf %44, %39 : vector<8x8xf32>
      %50 = vector.shape_cast %49 : vector<8x8xf32> to vector<1x8x8xf32>
      %cst_17 = arith.constant dense<0.000000e+00> : vector<1xf32>
      %51 = vector.multi_reduction <add>, %50, %cst_17 [1, 2] : vector<1x8x8xf32> to vector<1xf32>
      %52 = vector.shape_cast %51 : vector<1xf32> to vector<1x1x1xf32>
      %53 = vector.extract %52[0, 0, 0] : f32 from vector<1x1x1xf32>
      %cst_18 = arith.constant 1.600000e+01 : f32
      %54 = arith.divf %53, %cst_18 : f32
      %55 = vector.broadcast %46 : vector<8x1xf32> to vector<8x8xf32>
      %56 = vector.broadcast %48 : vector<1x8xf32> to vector<8x8xf32>
      %57 = arith.mulf %55, %56 : vector<8x8xf32>
      %58 = arith.mulf %44, %57 : vector<8x8xf32>
      %59 = vector.shape_cast %58 : vector<8x8xf32> to vector<1x8x8xf32>
      %cst_19 = arith.constant dense<0.000000e+00> : vector<1xf32>
      %60 = vector.multi_reduction <add>, %59, %cst_19 [1, 2] : vector<1x8x8xf32> to vector<1xf32>
      %61 = vector.shape_cast %60 : vector<1xf32> to vector<1x1x1xf32>
      %62 = vector.extract %61[0, 0, 0] : f32 from vector<1x1x1xf32>
      %cst_20 = arith.constant 1.600000e+01 : f32
      %cst_21 = arith.constant 1.600000e+01 : f32
      %63 = arith.mulf %cst_20, %cst_21 : f32
      %64 = arith.divf %62, %63 : f32
      %65 = arith.divf %54, %64 : f32
      %cst_22 = arith.constant 1.000000e+00 : f32
      %66 = arith.subf %cst_22, %65 : f32
      %c0_23 = arith.constant 0 : index
      %c0_24 = arith.constant 0 : index
      %67 = memref.load %arg3[%c0_23, %c0_24] : memref<1x1xf32, #tpu.memory_space<smem>>
      memref.store %66, %arg3[%c0_23, %c0_24] : memref<1x1xf32, #tpu.memory_space<smem>>
    } else {
    }
    return
  }
  func.func @transform_0(%arg0: i32) -> (i32, i32) {
    %c0_i32 = arith.constant 0 : i32
    %c0_i32_0 = arith.constant 0 : i32
    return %c0_i32, %arg0 : i32, i32
  }
  func.func @transform_1(%arg0: i32) -> (i32, i32) {
    %c0_i32 = arith.constant 0 : i32
    %c0_i32_0 = arith.constant 0 : i32
    return %c0_i32, %arg0 : i32, i32
  }
  func.func @transform_2(%arg0: i32) -> (i32, i32) {
    %c0_i32 = arith.constant 0 : i32
    %c0_i32_0 = arith.constant 0 : i32
    %c0_i32_1 = arith.constant 0 : i32
    return %c0_i32, %c0_i32_0 : i32, i32
  }
}

</mosaic_0001>

<llo_original>
// kernel: tpu_custom_call.1
$region0: #{tpu_custom_call.1}
  #allocation0 [shape = 'u32[]', space=smem, size = 0x4, offset = 0x4, fixed_abs, tag = 'smem constant byte address 0x4 - core index']
  #allocation1 [shape = 'u32[144,128]{1,0:T(1,128)}', space=vmem, size = 0x12000, scoped, tag = 'internal scratch']
  #allocation2 [shape = 'f32[8,8]{1,0:T(8,128)}', space=vmem, size = 0x1000, scoped, tag = 'scratch operand']
  %s0 = inlined_call_operand.hbm [shape: f32[8,16], index: 0, kind: input, shape index: {}]
  %s1 = inlined_call_operand.vmem [shape: s32[1,16], index: 1, kind: input, shape index: {}]
  %s2 = inlined_call_operand.hbm [shape: f32[1,1], index: 2, kind: output, shape index: {}]
  %s3 = sld [smem:[#allocation0]]
  $region30: #{tpu_custom_call.1} parent=0
    _
  %s5 = ssub.s32 1, %s3
  %s6 = scalar_select 0, %s5, %s3
  $region1: #{tpu_custom_call.1} parent=0
    #allocation3 [shape = 'u8[4096]{0}', space=vmem, size = 0x1000, scoped, tag = 'input window, operand 0, single buffered']
    #allocation4 [shape = 's32[1]{0}', space=sflag, size = 0x4, scoped, tag = 'scoped memory for tpu_custom_call.1']
    #allocation5 [shape = 's32[1]{0}', space=sflag, size = 0x4, scoped, tag = 'scoped memory for tpu_custom_call.1']
    #allocation6 [shape = 'u8[512]{0}', space=smem, size = 0x200, scoped, tag = 'output window, operand 0, single buffered']
    %7 = vsyncpa [#allocation4], 0
    %8 = vsyncpa [#allocation5], 0
    // Predicated region
    $region2: #{tpu_custom_call.1} parent=1 // pred_check
      _
    $region3: #{tpu_custom_call.1} parent=1 // pred_check_branch
      %10 = sbr.rel (0) target = $region5
    $region4: #{tpu_custom_call.1} parent=1 // pred_region
      %s12 = ssub.s32 128, 128
      %13 = vsyncadd [#allocation4], %s12
      %s15 = sshll.u32 [#allocation3], 4
      %s16 = int_to_ptr.vmem [resolvable:$true] %s15
      %18 = dma.hbm_to_vmem [thread:$0]  %s0, 128, %s16, [#allocation4]
    $region5: #{tpu_custom_call.1} parent=1 // pred_fallthru
      _
    // Predicated region
    $region6: #{tpu_custom_call.1} parent=1 // pred_check
      _
    $region7: #{tpu_custom_call.1} parent=1 // pred_check_branch
      %20 = sbr.rel (0) target = $region9
    $region8: #{tpu_custom_call.1} parent=1 // pred_region
      _
    $region9: #{tpu_custom_call.1} parent=1 // pred_fallthru
      _
    // Predicated region
    $region10: #{tpu_custom_call.1} parent=1 // pred_check
      _
    $region11: #{tpu_custom_call.1} parent=1 // pred_check_branch
      %22 = sbr.rel (0) target = $region13
    $region12: #{tpu_custom_call.1} parent=1 // pred_region
      %23 = dma.done [#allocation4], 128
    $region13: #{tpu_custom_call.1} parent=1 // pred_fallthru
      _
    %p25 = scmp.eq.s32.totalorder 0, 0
    // Predicated region
    $region14: #{tpu_custom_call.1} parent=1 // pred_check
      %p26 = pneg %p25
    $region15: #{tpu_custom_call.1} parent=1 // pred_check_branch
      %28 = sbr.rel (%p26) target = $region17
    $region16: #{tpu_custom_call.1} parent=1 // pred_region
      %vm29 = vcmask 64512
      %30 = vst.msk [vmem:[#allocation2] sm:$0xff] %vm29, 0.0
    $region17: #{tpu_custom_call.1} parent=1 // pred_fallthru
      _
    %v31 = vld [vmem:[#allocation3] sm:$0xff]
    %v32 = vld [vmem:[%s1] sm:$0x1]
    %v33 = vlaneseq
    %v34 = vand.u32 %v33, 127
    %s35 = smul.u32 0, 16
    %v36 = vstv %s35
    %v37 = vadd.s32 %v34, %v36
    %vm38 = vcmp.lt.s32.totalorder %v37, 16
    %v39 = vlaneseq
    %v40 = vshrl.u32 %v39, 7
    %vm41 = vcmask 130048
    %v42 = vsel %vm41, %v31, -inf
    %v43 = vrot.slane %v42, 4
    %v44 = vmax.f32 %v42, %v43
    %v45 = vrot.slane %v44, 2
    %v46 = vmax.f32 %v44, %v45
    %v47 = vrot.slane %v46, 1
    %v48 = vmax.f32 %v46, %v47
    %vm49 = vcmp.ge.f32.partialorder %v31, %v48
    %v50 = vsel %vm49, %v40, 8
    %v51 = vsel %vm41, %v50, 2147483647
    %v52 = vrot.slane %v51, 4
    %vm53 = vcmp.lt.s32.totalorder %v51, %v52
    %v54 = vsel %vm53, %v51, %v52
    %v55 = vrot.slane %v54, 2
    %vm56 = vcmp.lt.s32.totalorder %v54, %v55
    %v57 = vsel %vm56, %v54, %v55
    %v58 = vrot.slane %v57, 1
    %vm59 = vcmp.lt.s32.totalorder %v57, %v58
    %v60 = vsel %vm59, %v57, %v58
    %vm61 = vcmp.eq.s32.totalorder %v40, %v60
    %v62 = vsel %vm61, 1, 0
    %v63 = vcvt.s32.f32 %v62
    %v64 = vpack.c.bf16 %v63, %v63
    %v65 = vlaneseq
    %v66 = vshrl.u32 %v65, 7
    %v67 = vsub.s32 0, %v66
    %v68 = vrot.slane %v32, %v67
    %vm69 = vcmp.eq.s32.totalorder %v40, %v68
    %v70 = vsel %vm38, 1, 0
    %vm71 = vcmp.eq.s32.totalorder %v70, 1
    %vm72 = vmand %vm69, %vm71
    %v73 = vsel %vm72, 1, 0
    %v74 = vcvt.s32.f32 %v73
    %v75 = vpack.c.bf16 %v74, %v74
    %v76 = vld [vmem:[#allocation2] sm:$0xff]
    %v78 = vsel %vm41, %v75, 0
    %v81 = vsel %vm41, %v64, 0
    %83 = vmatprep.subr.bf16.mxu0 0
    %84 = vmatpush1.bf16.xpose.msra.mxu0 %v81
    %85 = vmatprep.subr.bf16.mxu0 0
    %86 = vmatpush1.bf16.xpose.msra.mxu0 0
    %87 = vmatprep.subr.bf16.mxu0 0
    %88 = vmatpush1.bf16.xpose.msra.mxu0 0
    %89 = vmatprep.subr.bf16.mxu0 0
    %90 = vmatpush1.bf16.xpose.msra.mxu0 0
    %91 = vmatprep.subr.bf16.mxu0 0
    %92 = vmatpush1.bf16.xpose.msra.mxu0 0
    %93 = vmatprep.subr.bf16.mxu0 0
    %94 = vmatpush1.bf16.xpose.msra.mxu0 0
    %95 = vmatprep.subr.bf16.mxu0 0
    %96 = vmatpush1.bf16.xpose.msra.mxu0 0
    %97 = vmatprep.subr.bf16.mxu0 0
    %98 = vmatpush1.bf16.xpose.msra.mxu0 0
    %99 = vmatprep.subr.bf16.mxu0 0
    %100 = vmatpush1.bf16.xpose.msra.mxu0 0
    %101 = vmatprep.subr.bf16.mxu0 0
    %102 = vmatpush1.bf16.xpose.msra.mxu0 0
    %103 = vmatprep.subr.bf16.mxu0 0
    %104 = vmatpush1.bf16.xpose.msra.mxu0 0
    %105 = vmatprep.subr.bf16.mxu0 0
    %106 = vmatpush1.bf16.xpose.msra.mxu0 0
    %107 = vmatprep.subr.bf16.mxu0 0
    %108 = vmatpush1.bf16.xpose.msra.mxu0 0
    %109 = vmatprep.subr.bf16.mxu0 0
    %110 = vmatpush1.bf16.xpose.msra.mxu0 0
    %111 = vmatprep.subr.bf16.mxu0 0
    %112 = vmatpush1.bf16.xpose.msra.mxu0 0
    %113 = vmatprep.subr.bf16.mxu0 0
    %114 = vmatpush1.bf16.xpose.msra.mxu0 0
    %115 = vmatprep.mubr.bf16.mxu0 0
    %116 = vmatmul.mubr.bf16.gmra.mrb[0].mxu0 %v78
    %v117 = vpop.f32.mrb[0].mxu0
    %v118 = vadd.f32 0.0, %v117
    %v119 = vpop.f32.mrb[0].mxu0
    %v120 = vpop.f32.mrb[0].mxu0
    %v121 = vpop.f32.mrb[0].mxu0
    %122 = vdwg.mxu0
    %v123 = vadd.f32 %v76, %v118
    %vm124 = vcmask 64512
    %125 = vst.msk [vmem:[#allocation2] sm:$0xff] %vm124, %v123
    // Predicated region
    $region18: #{tpu_custom_call.1} parent=1 // pred_check
      %p126 = pneg %p25
    $region19: #{tpu_custom_call.1} parent=1 // pred_check_branch
      %128 = sbr.rel (%p126) target = $region21
    $region20: #{tpu_custom_call.1} parent=1 // pred_region
      %v129 = vld [vmem:[#allocation2] sm:$0xff]
      %v130 = vsub.s32 %v40, %v34
      %v131 = vcvt.s32.f32 %v130
      %v132 = vmul.f32 %v131, %v131
      %v133 = vsel %vm124, %v129, 0.0
      %134 = vadd.xlane.f32.xlu0 %v133
      %v135 = vpop.xlane.xlu0 %134
      %v136 = vrot.slane %v133, 4
      %v137 = vadd.f32 %v133, %v136
      %v138 = vrot.slane %v137, 2
      %v139 = vadd.f32 %v137, %v138
      %v140 = vrot.slane %v139, 1
      %v141 = vadd.f32 %v139, %v140
      %v142 = vmul.f32 %v132, %v129
      %v143 = vsel %vm124, %v142, 0.0
      %144 = vadd.xlane.f32.xlu0 %v143
      %v145 = vpop.xlane.xlu0 %144
      %v146 = vrot.slane %v145, 4
      %v147 = vadd.f32 %v145, %v146
      %v148 = vrot.slane %v147, 2
      %v149 = vadd.f32 %v147, %v148
      %v150 = vrot.slane %v149, 1
      %v151 = vadd.f32 %v149, %v150
      %s152 = vtos %v151
      %v153 = vrcp.pop 16.0
      %s154 = vtos %v153
      %s155 = smul.f32 %s152, %s154
      %v156 = vmul.f32 %v135, %v141
      %v157 = vmul.f32 %v132, %v156
      %v158 = vsel %vm124, %v157, 0.0
      %159 = vadd.xlane.f32.xlu0 %v158
      %v160 = vpop.xlane.xlu0 %159
      %v161 = vrot.slane %v160, 4
      %v162 = vadd.f32 %v160, %v161
      %v163 = vrot.slane %v162, 2
      %v164 = vadd.f32 %v162, %v163
      %v165 = vrot.slane %v164, 1
      %v166 = vadd.f32 %v164, %v165
      %s167 = vtos %v166
      %v168 = vrcp.pop 256.0
      %s169 = vtos %v168
      %s170 = smul.f32 %s167, %s169
      %v171 = vstv %s170
      %v172 = vrcp.pop %v171
      %s173 = vtos %v172
      %s174 = smul.f32 %s155, %s173
      %s175 = ssub.f32 1.0, %s174
      %s176 = scalar_lea.smem [#allocation6], 0
      %177 = sst [smem:[%s176]] %s175
    $region21: #{tpu_custom_call.1} parent=1 // pred_fallthru
      _
    // Predicated region
    $region22: #{tpu_custom_call.1} parent=1 // pred_check
      _
    $region23: #{tpu_custom_call.1} parent=1 // pred_check_branch
      %179 = sbr.rel (0) target = $region25
    $region24: #{tpu_custom_call.1} parent=1 // pred_region
      %s181 = ssub.s32 16, 16
      %182 = vsyncadd [#allocation5], %s181
      %185 = dma.smem_to_hbm [#allocation6], 16, %s2, [#allocation5]
    $region25: #{tpu_custom_call.1} parent=1 // pred_fallthru
      _
    // Predicated region
    $region26: #{tpu_custom_call.1} parent=1 // pred_check
      _
    $region27: #{tpu_custom_call.1} parent=1 // pred_check_branch
      %187 = sbr.rel (0) target = $region29
    $region28: #{tpu_custom_call.1} parent=1 // pred_region
      %188 = dma.done [#allocation5], 16
    $region29: #{tpu_custom_call.1} parent=1 // pred_fallthru
      _
    %189 = sfence
    %190 = vsyncpa [#allocation4], 1
    %191 = vsyncpa [#allocation5], 1

</llo_original>
